<compile_context>
chip_gen: v6e
topology: v6e:2x2x1
jax: 0.10.0
libtpu: 0.0.40
codegen_flags: <defaults>
</compile_context>

<pallas_src>
import functools

import jax
import jax.numpy as jnp
from jax.experimental import pallas as pl
from jax.experimental.pallas import tpu as pltpu


def _make_decoder_kernel(num_layers: int, matmul_dtype):
    """Kernel whose arity matches the number of linear layers."""

    def kernel(packed_ref, *rest):
        # rest = (W_0..W_{L-1}, b_0..b_{L-1}, out_ref)
        w_refs = rest[:num_layers]
        b_refs = rest[num_layers:2 * num_layers]
        o_ref = rest[2 * num_layers]

        # packed_ref: [3, latent, TB]  ->  mean / std / eps, batch on lanes.
        mean = packed_ref[0]
        std = packed_ref[1]
        eps = packed_ref[2]

        # Reparameterized sample of Normal(mean, std):  x = mean + std * eps.
        x = mean + std * eps                               # [latent, TB], f32

        # Chain of Linear + ReLU, computed as W @ X (weights are [out, in]).
        for i in range(num_layers):
            w = w_refs[i][...].astype(matmul_dtype)
            y = jnp.dot(w, x.astype(matmul_dtype),
                        preferred_element_type=jnp.float32)   # [out_i, TB]
            x = jnp.maximum(y + b_refs[i][...], 0.0)          # bias [out_i,1] bcast on lanes

        o_ref[...] = x.astype(o_ref.dtype)                    # lane-dense store

    return kernel


def prepare_decoder_params(weights, biases):
    """One-time parameter layout (hoisted out of the per-call path).

    Weights stay in PyTorch-native [out, in] layout (exactly what W @ X needs,
    so the old per-call transpose is gone); biases become column vectors
    [out, 1] that broadcast across the lane (batch) dimension.
    """
    ws = [jnp.asarray(w, jnp.float32) for w in weights]
    bs = [jnp.asarray(b, jnp.float32).reshape(-1, 1) for b in biases]
    return ws, bs


def decoder_forward(mean, std, eps, ws, bs, *, tb=128,
                    matmul_dtype=jnp.float32):
    """mean/std/eps: [B, latent]; ws[i]: [out_i, in_i]; bs[i]: [out_i, 1]."""
    num_layers = len(ws)
    B, latent = mean.shape
    num_features = ws[-1].shape[0]

    # Layout plumbing (not compute): pack the three input streams into one
    # slab and put batch on lanes: [3, latent, B_pad].
    b_pad = pl.cdiv(B, tb) * tb
    packed = jnp.transpose(jnp.stack([mean, std, eps], axis=0), (0, 2, 1))
    if b_pad != B:
        packed = jnp.pad(packed, ((0, 0), (0, 0), (0, b_pad - B)))

    kernel = _make_decoder_kernel(num_layers, matmul_dtype)

    in_specs = [pl.BlockSpec((3, latent, tb), lambda i: (0, 0, i))]
    # Weights / biases are resident across the whole grid (same block index).
    in_specs += [pl.BlockSpec(w.shape, lambda i: (0, 0)) for w in ws]
    in_specs += [pl.BlockSpec(b.shape, lambda i: (0, 0)) for b in bs]

    out_t = pl.pallas_call(
        kernel,
        out_shape=jax.ShapeDtypeStruct((num_features, b_pad), jnp.float32),
        grid_spec=pltpu.PrefetchScalarGridSpec(
            num_scalar_prefetch=0,
            grid=(b_pad // tb,),
            in_specs=in_specs,
            out_specs=pl.BlockSpec((num_features, tb), lambda i: (0, i)),
        ),
        compiler_params=pltpu.CompilerParams(
            dimension_semantics=("parallel",)),
    )(packed, *ws, *bs)

    # Back to the module's [B, num_features] layout, dropping batch padding.
    return out_t[:, :B].T


def reference_forward(mean, std, eps, weights, biases):
    x = mean + std * eps
    for w, b in zip(weights, biases):
        x = jnp.maximum(x @ w.T + b, 0.0)
    return x


if __name__ == "__main__":
    # Module config: channel_sizes=[32, 16], latent_size=8, num_features=4
    #   -> layer dims [8, 16, 32, 4]  (latent, reversed(channel_sizes), num_features)
    channel_sizes = [32, 16]
    latent_size = 8
    num_features = 4
    dims = [latent_size] + list(reversed(channel_sizes)) + [num_features]
    num_layers = len(dims) - 1

    key = jax.random.PRNGKey(0)
    keys = jax.random.split(key, 3 + 2 * num_layers)

    # B deliberately NOT a multiple of the 128-lane tile to exercise padding.
    B = 200
    mean = jax.random.normal(keys[0], (B, latent_size), dtype=jnp.float32)
    std = jax.nn.softplus(
        jax.random.normal(keys[1], (B, latent_size))).astype(jnp.float32)
    # eps is passed in (host RNG) so the kernel is deterministic & verifiable.
    # TODO(synk): optionally generate eps in-kernel via pltpu.prng_random_bits
    # + Box-Muller to drop one of the input streams entirely.
    eps = jax.random.normal(keys[2], (B, latent_size), dtype=jnp.float32)

    weights, biases = [], []
    for li in range(num_layers):
        fan_in, fan_out = dims[li], dims[li + 1]
        bound = 1.0 / (fan_in ** 0.5)
        w = jax.random.uniform(keys[3 + 2 * li], (fan_out, fan_in),
                               minval=-bound, maxval=bound, dtype=jnp.float32)
        b = jax.random.uniform(keys[4 + 2 * li], (fan_out,),
                               minval=-bound, maxval=bound, dtype=jnp.float32)
        weights.append(w)
        biases.append(b)

    # One-time parameter layout (no per-call transpose).
    ws, bs = prepare_decoder_params(weights, biases)

    ref = reference_forward(mean, std, eps, weights, biases)

    # f32 matmul path (tight check).
    out = decoder_forward(mean, std, eps, ws, bs, tb=128)
    out = jax.block_until_ready(out)
    assert out.shape == (B, num_features)
    assert jnp.allclose(out, ref, atol=1e-5, rtol=1e-5), "f32 mismatch vs reference"

    # bf16-operand matmul path (MXU-native on v5e/v6e/v7x; f32 accumulation,
    # f32 bias + ReLU) — looser tolerance from bf16 operand rounding.
    out_bf16 = decoder_forward(mean, std, eps, ws, bs, tb=128,
                               matmul_dtype=jnp.bfloat16)
    out_bf16 = jax.block_until_ready(out_bf16)
    assert jnp.allclose(out_bf16, ref, atol=5e-2, rtol=5e-2), "bf16 mismatch vs reference"

    print("KERNEL_OK")
</pallas_src>

<mosaic_0001>
module attributes {stable_mosaic.version = 11 : i64} {
  func.func @kernel(%arg0: i32, %arg1: memref<3x8x128xf32, #tpu.memory_space<vmem>>, %arg2: memref<16x8xf32, #tpu.memory_space<vmem>>, %arg3: memref<32x16xf32, #tpu.memory_space<vmem>>, %arg4: memref<4x32xf32, #tpu.memory_space<vmem>>, %arg5: memref<16x1xf32, #tpu.memory_space<vmem>>, %arg6: memref<32x1xf32, #tpu.memory_space<vmem>>, %arg7: memref<4x1xf32, #tpu.memory_space<vmem>>, %arg8: memref<4x128xf32, #tpu.memory_space<vmem>>) attributes {dimension_semantics = [#tpu.dimension_semantics<parallel>], iteration_bounds = array<i64: 2>, scalar_prefetch = 0 : i64, scratch_operands = 0 : i64, tpu.core_type = #tpu.core_type<tc>, window_params = [{transform_indices = @transform_0, window_bounds = array<i64: 3, 8, 128>}, {pipeline_mode = #tpu.pipeline_mode<synchronous>, transform_indices = @transform_1, window_bounds = array<i64: 16, 8>}, {pipeline_mode = #tpu.pipeline_mode<synchronous>, transform_indices = @transform_2, window_bounds = array<i64: 32, 16>}, {pipeline_mode = #tpu.pipeline_mode<synchronous>, transform_indices = @transform_3, window_bounds = array<i64: 4, 32>}, {pipeline_mode = #tpu.pipeline_mode<synchronous>, transform_indices = @transform_4, window_bounds = array<i64: 16, 1>}, {pipeline_mode = #tpu.pipeline_mode<synchronous>, transform_indices = @transform_5, window_bounds = array<i64: 32, 1>}, {pipeline_mode = #tpu.pipeline_mode<synchronous>, transform_indices = @transform_6, window_bounds = array<i64: 4, 1>}, {transform_indices = @transform_7, window_bounds = array<i64: 4, 128>}]} {
    %c0 = arith.constant 0 : index
    %c0_0 = arith.constant 0 : index
    %c0_1 = arith.constant 0 : index
    %0 = vector.load %arg1[%c0, %c0_0, %c0_1] : memref<3x8x128xf32, #tpu.memory_space<vmem>>, vector<1x8x128xf32>
    %1 = vector.shape_cast %0 : vector<1x8x128xf32> to vector<8x128xf32>
    %c1 = arith.constant 1 : index
    %c0_2 = arith.constant 0 : index
    %c0_3 = arith.constant 0 : index
    %2 = vector.load %arg1[%c1, %c0_2, %c0_3] : memref<3x8x128xf32, #tpu.memory_space<vmem>>, vector<1x8x128xf32>
    %3 = vector.shape_cast %2 : vector<1x8x128xf32> to vector<8x128xf32>
    %c2 = arith.constant 2 : index
    %c0_4 = arith.constant 0 : index
    %c0_5 = arith.constant 0 : index
    %4 = vector.load %arg1[%c2, %c0_4, %c0_5] : memref<3x8x128xf32, #tpu.memory_space<vmem>>, vector<1x8x128xf32>
    %5 = vector.shape_cast %4 : vector<1x8x128xf32> to vector<8x128xf32>
    %6 = arith.mulf %3, %5 : vector<8x128xf32>
    %7 = arith.addf %1, %6 : vector<8x128xf32>
    %c0_6 = arith.constant 0 : index
    %c0_7 = arith.constant 0 : index
    %8 = vector.load %arg2[%c0_6, %c0_7] : memref<16x8xf32, #tpu.memory_space<vmem>>, vector<16x8xf32>
    %cst = arith.constant dense<0.000000e+00> : vector<16x128xf32>
    %9 = tpu.matmul %8, %7, %cst {dimension_numbers = #tpu.dot_dimension_numbers<[1], [0], [0], [1], [0, 0, 1, 1], [], []>} : vector<16x8xf32>, vector<8x128xf32>, vector<16x128xf32> -> vector<16x128xf32>
    %c0_8 = arith.constant 0 : index
    %c0_9 = arith.constant 0 : index
    %10 = vector.load %arg5[%c0_8, %c0_9] : memref<16x1xf32, #tpu.memory_space<vmem>>, vector<16x1xf32>
    %11 = vector.broadcast %10 : vector<16x1xf32> to vector<16x128xf32>
    %12 = arith.addf %9, %11 : vector<16x128xf32>
    %cst_10 = arith.constant 0.000000e+00 : f32
    %13 = vector.broadcast %cst_10 : f32 to vector<16x128xf32>
    %14 = arith.maximumf %12, %13 : vector<16x128xf32>
    %c0_11 = arith.constant 0 : index
    %c0_12 = arith.constant 0 : index
    %15 = vector.load %arg3[%c0_11, %c0_12] : memref<32x16xf32, #tpu.memory_space<vmem>>, vector<32x16xf32>
    %cst_13 = arith.constant dense<0.000000e+00> : vector<32x128xf32>
    %16 = tpu.matmul %15, %14, %cst_13 {dimension_numbers = #tpu.dot_dimension_numbers<[1], [0], [0], [1], [0, 0, 1, 1], [], []>} : vector<32x16xf32>, vector<16x128xf32>, vector<32x128xf32> -> vector<32x128xf32>
    %c0_14 = arith.constant 0 : index
    %c0_15 = arith.constant 0 : index
    %17 = vector.load %arg6[%c0_14, %c0_15] : memref<32x1xf32, #tpu.memory_space<vmem>>, vector<32x1xf32>
    %18 = vector.broadcast %17 : vector<32x1xf32> to vector<32x128xf32>
    %19 = arith.addf %16, %18 : vector<32x128xf32>
    %cst_16 = arith.constant 0.000000e+00 : f32
    %20 = vector.broadcast %cst_16 : f32 to vector<32x128xf32>
    %21 = arith.maximumf %19, %20 : vector<32x128xf32>
    %c0_17 = arith.constant 0 : index
    %c0_18 = arith.constant 0 : index
    %22 = vector.load %arg4[%c0_17, %c0_18] : memref<4x32xf32, #tpu.memory_space<vmem>>, vector<4x32xf32>
    %cst_19 = arith.constant dense<0.000000e+00> : vector<4x128xf32>
    %23 = tpu.matmul %22, %21, %cst_19 {dimension_numbers = #tpu.dot_dimension_numbers<[1], [0], [0], [1], [0, 0, 1, 1], [], []>} : vector<4x32xf32>, vector<32x128xf32>, vector<4x128xf32> -> vector<4x128xf32>
    %c0_20 = arith.constant 0 : index
    %c0_21 = arith.constant 0 : index
    %24 = vector.load %arg7[%c0_20, %c0_21] : memref<4x1xf32, #tpu.memory_space<vmem>>, vector<4x1xf32>
    %25 = vector.broadcast %24 : vector<4x1xf32> to vector<4x128xf32>
    %26 = arith.addf %23, %25 : vector<4x128xf32>
    %cst_22 = arith.constant 0.000000e+00 : f32
    %27 = vector.broadcast %cst_22 : f32 to vector<4x128xf32>
    %28 = arith.maximumf %26, %27 : vector<4x128xf32>
    %c0_23 = arith.constant 0 : index
    %c0_24 = arith.constant 0 : index
    %29 = vector.load %arg8[%c0_23, %c0_24] : memref<4x128xf32, #tpu.memory_space<vmem>>, vector<4x128xf32>
    tpu.vector_store %arg8[%c0_23, %c0_24], %28 {strides = array<i32>} : memref<4x128xf32, #tpu.memory_space<vmem>>, vector<4x128xf32>,
    return
  }
  func.func @transform_0(%arg0: i32) -> (i32, i32, i32) {
    %c0_i32 = arith.constant 0 : i32
    %c0_i32_0 = arith.constant 0 : i32
    %c0_i32_1 = arith.constant 0 : i32
    return %c0_i32, %c0_i32_0, %arg0 : i32, i32, i32
  }
  func.func @transform_1(%arg0: i32) -> (i32, i32) {
    %c0_i32 = arith.constant 0 : i32
    %c0_i32_0 = arith.constant 0 : i32
    %c0_i32_1 = arith.constant 0 : i32
    return %c0_i32, %c0_i32_0 : i32, i32
  }
  func.func @transform_2(%arg0: i32) -> (i32, i32) {
    %c0_i32 = arith.constant 0 : i32
    %c0_i32_0 = arith.constant 0 : i32
    %c0_i32_1 = arith.constant 0 : i32
    return %c0_i32, %c0_i32_0 : i32, i32
  }
  func.func @transform_3(%arg0: i32) -> (i32, i32) {
    %c0_i32 = arith.constant 0 : i32
    %c0_i32_0 = arith.constant 0 : i32
    %c0_i32_1 = arith.constant 0 : i32
    return %c0_i32, %c0_i32_0 : i32, i32
  }
  func.func @transform_4(%arg0: i32) -> (i32, i32) {
    %c0_i32 = arith.constant 0 : i32
    %c0_i32_0 = arith.constant 0 : i32
    %c0_i32_1 = arith.constant 0 : i32
    return %c0_i32, %c0_i32_0 : i32, i32
  }
  func.func @transform_5(%arg0: i32) -> (i32, i32) {
    %c0_i32 = arith.constant 0 : i32
    %c0_i32_0 = arith.constant 0 : i32
    %c0_i32_1 = arith.constant 0 : i32
    return %c0_i32, %c0_i32_0 : i32, i32
  }
  func.func @transform_6(%arg0: i32) -> (i32, i32) {
    %c0_i32 = arith.constant 0 : i32
    %c0_i32_0 = arith.constant 0 : i32
    %c0_i32_1 = arith.constant 0 : i32
    return %c0_i32, %c0_i32_0 : i32, i32
  }
  func.func @transform_7(%arg0: i32) -> (i32, i32) {
    %c0_i32 = arith.constant 0 : i32
    %c0_i32_0 = arith.constant 0 : i32
    return %c0_i32, %arg0 : i32, i32
  }
}

</mosaic_0001>

<llo_original>
// kernel: tpu_custom_call.1
$region0: #{tpu_custom_call.1}
  #allocation0 [shape = 'u32[]', space=smem, size = 0x4, offset = 0x4, fixed_abs, tag = 'smem constant byte address 0x4 - core index']
  #allocation1 [shape = 'u32[144,128]{1,0:T(1,128)}', space=vmem, size = 0x12000, scoped, tag = 'internal scratch']
  %s0 = inlined_call_operand.vmem [shape: f32[3,8,256], index: 0, kind: input, shape index: {}]
  %s1 = inlined_call_operand.vmem [shape: f32[16,8], index: 1, kind: input, shape index: {}]
  %s2 = inlined_call_operand.vmem [shape: f32[32,16], index: 2, kind: input, shape index: {}]
  %s3 = inlined_call_operand.vmem [shape: f32[4,32], index: 3, kind: input, shape index: {}]
  %s4 = inlined_call_operand.vmem [shape: f32[16,1], index: 4, kind: input, shape index: {}]
  %s5 = inlined_call_operand.vmem [shape: f32[32,1], index: 5, kind: input, shape index: {}]
  %s6 = inlined_call_operand.vmem [shape: f32[4,1], index: 6, kind: input, shape index: {}]
  %s7 = inlined_call_operand.hbm [shape: f32[4,256], index: 7, kind: output, shape index: {}]
  %s8 = sld [smem:[#allocation0]]
  $region99: #{tpu_custom_call.1} parent=0
    _
  %s10 = ssub.s32 1, %s8
  %s11 = scalar_select 0, %s10, %s8
  $region1: #{tpu_custom_call.1} parent=0
    #allocation2 [shape = 'u8[24576]{0}', space=vmem, size = 0x6000, scoped, tag = 'input window, operand 0']
    #allocation3 [shape = 'u8[4096]{0}', space=vmem, size = 0x1000, scoped, tag = 'output window, operand 0']
    #allocation4 [shape = 's32[2]{0}', space=sflag, size = 0x8, scoped, tag = 'scoped memory for tpu_custom_call.1']
    %12 = vsyncpa [#allocation4], 0
    %s13 = scalar_lea.sflag [#allocation4], 1
    %14 = vsyncpa %s13, 0
    loop: start=0, step=1, limit=4
    $region2: #{tpu_custom_call.1} parent=1 // loop_pre_header
      _
    $region3: #{tpu_custom_call.1} parent=1 // loop_header
      %s16 = sphi 0, %s20
      %p17 = scmp.ge.s32.totalorder %s16, 4
      %s26 = sphi 0, %s28
      %s29 = sphi 0, %s26
      %s30 = sphi 0, %s29
      %s46 = sphi 0, %s30
      %s50 = sphi 0, %s50
      %s52 = sphi 0, %s50
      %s53 = sphi 0, %s52
      %s67 = sphi 0, %s53
      %s71 = sphi 0, %s71
      %s73 = sphi 0, %s71
      %s74 = sphi 0, %s73
      %s88 = sphi 0, %s74
      %s92 = sphi 0, %s92
      %s94 = sphi 0, %s92
      %s95 = sphi 0, %s94
      %s109 = sphi 0, %s95
      %s113 = sphi 0, %s113
      %s115 = sphi 0, %s113
      %s116 = sphi 0, %s115
      %s130 = sphi 0, %s116
      %s134 = sphi 0, %s134
      %s136 = sphi 0, %s134
      %s137 = sphi 0, %s136
      %s151 = sphi 0, %s137
      %s155 = sphi 0, %s155
      %s157 = sphi 0, %s155
      %s158 = sphi 0, %s157
      %s172 = sphi 0, %s158
      %s178 = sphi 0, %s180
      %s181 = sphi 0, %s178
      %s182 = sphi 0, %s181
      %s198 = sphi 0, %s182
    $region4: #{tpu_custom_call.1} parent=1 // loop_header_branch
      %19 = sbr.rel (%p17) target = $region8
    $region5: #{tpu_custom_call.1} parent=1 // loop_body
      %s21 = ssub.s32 %s16, 1
      %s22 = ssub.s32 %s16, 2
      %s23 = sadd.s32 %s16, 1
      %s24 = ssub.s32 %s16, %s23
      %p25 = scmp.eq.s32.totalorder %s24, 0
      %s27 = sadd.s32 %s26, 1
      %s28 = scalar_select %p25, %s26, %s27
      %p31 = pneg %p25
      %p32 = scmp.eq.s32.totalorder %s16, 1
      %p33 = por %p31, %p32
      %p34 = scmp.ne.s32.totalorder %s26, %s29
      %p35 = scmp.eq.s32.totalorder %s16, 0
      %p36 = por %p34, %p35
      %p37 = scmp.ne.s32.totalorder %s26, %s29
      %p38 = scmp.eq.s32.totalorder %s21, 1
      %p39 = por %p37, %p38
      %p40 = scmp.ne.s32.totalorder %s29, %s30
      %p41 = scmp.eq.s32.totalorder %s21, 0
      %p42 = por %p40, %p41
      %p43 = scmp.ne.s32.totalorder %s29, %s30
      %p44 = scmp.eq.s32.totalorder %s22, 1
      %p45 = por %p43, %p44
      %p47 = scmp.ne.s32.totalorder %s30, %s46
      %p48 = scmp.eq.s32.totalorder %s22, 0
      %p49 = por %p47, %p48
      %s51 = sadd.s32 %s50, 1
      %p54 = scmp.eq.s32.totalorder %s16, 1
      %p55 = scmp.ne.s32.totalorder %s50, %s52
      %p56 = scmp.eq.s32.totalorder %s16, 0
      %p57 = por %p55, %p56
      %p58 = scmp.ne.s32.totalorder %s50, %s52
      %p59 = scmp.eq.s32.totalorder %s21, 1
      %p60 = por %p58, %p59
      %p61 = scmp.ne.s32.totalorder %s52, %s53
      %p62 = scmp.eq.s32.totalorder %s21, 0
      %p63 = por %p61, %p62
      %p64 = scmp.ne.s32.totalorder %s52, %s53
      %p65 = scmp.eq.s32.totalorder %s22, 1
      %p66 = por %p64, %p65
      %p68 = scmp.ne.s32.totalorder %s53, %s67
      %p69 = scmp.eq.s32.totalorder %s22, 0
      %p70 = por %p68, %p69
      %s72 = sadd.s32 %s71, 1
      %p75 = scmp.eq.s32.totalorder %s16, 1
      %p76 = scmp.ne.s32.totalorder %s71, %s73
      %p77 = scmp.eq.s32.totalorder %s16, 0
      %p78 = por %p76, %p77
      %p79 = scmp.ne.s32.totalorder %s71, %s73
      %p80 = scmp.eq.s32.totalorder %s21, 1
      %p81 = por %p79, %p80
      %p82 = scmp.ne.s32.totalorder %s73, %s74
      %p83 = scmp.eq.s32.totalorder %s21, 0
      %p84 = por %p82, %p83
      %p85 = scmp.ne.s32.totalorder %s73, %s74
      %p86 = scmp.eq.s32.totalorder %s22, 1
      %p87 = por %p85, %p86
      %p89 = scmp.ne.s32.totalorder %s74, %s88
      %p90 = scmp.eq.s32.totalorder %s22, 0
      %p91 = por %p89, %p90
      %s93 = sadd.s32 %s92, 1
      %p96 = scmp.eq.s32.totalorder %s16, 1
      %p97 = scmp.ne.s32.totalorder %s92, %s94
      %p98 = scmp.eq.s32.totalorder %s16, 0
      %p99 = por %p97, %p98
      %p100 = scmp.ne.s32.totalorder %s92, %s94
      %p101 = scmp.eq.s32.totalorder %s21, 1
      %p102 = por %p100, %p101
      %p103 = scmp.ne.s32.totalorder %s94, %s95
      %p104 = scmp.eq.s32.totalorder %s21, 0
      %p105 = por %p103, %p104
      %p106 = scmp.ne.s32.totalorder %s94, %s95
      %p107 = scmp.eq.s32.totalorder %s22, 1
      %p108 = por %p106, %p107
      %p110 = scmp.ne.s32.totalorder %s95, %s109
      %p111 = scmp.eq.s32.totalorder %s22, 0
      %p112 = por %p110, %p111
      %s114 = sadd.s32 %s113, 1
      %p117 = scmp.eq.s32.totalorder %s16, 1
      %p118 = scmp.ne.s32.totalorder %s113, %s115
      %p119 = scmp.eq.s32.totalorder %s16, 0
      %p120 = por %p118, %p119
      %p121 = scmp.ne.s32.totalorder %s113, %s115
      %p122 = scmp.eq.s32.totalorder %s21, 1
      %p123 = por %p121, %p122
      %p124 = scmp.ne.s32.totalorder %s115, %s116
      %p125 = scmp.eq.s32.totalorder %s21, 0
      %p126 = por %p124, %p125
      %p127 = scmp.ne.s32.totalorder %s115, %s116
      %p128 = scmp.eq.s32.totalorder %s22, 1
      %p129 = por %p127, %p128
      %p131 = scmp.ne.s32.totalorder %s116, %s130
      %p132 = scmp.eq.s32.totalorder %s22, 0
      %p133 = por %p131, %p132
      %s135 = sadd.s32 %s134, 1
      %p138 = scmp.eq.s32.totalorder %s16, 1
      %p139 = scmp.ne.s32.totalorder %s134, %s136
      %p140 = scmp.eq.s32.totalorder %s16, 0
      %p141 = por %p139, %p140
      %p142 = scmp.ne.s32.totalorder %s134, %s136
      %p143 = scmp.eq.s32.totalorder %s21, 1
      %p144 = por %p142, %p143
      %p145 = scmp.ne.s32.totalorder %s136, %s137
      %p146 = scmp.eq.s32.totalorder %s21, 0
      %p147 = por %p145, %p146
      %p148 = scmp.ne.s32.totalorder %s136, %s137
      %p149 = scmp.eq.s32.totalorder %s22, 1
      %p150 = por %p148, %p149
      %p152 = scmp.ne.s32.totalorder %s137, %s151
      %p153 = scmp.eq.s32.totalorder %s22, 0
      %p154 = por %p152, %p153
      %s156 = sadd.s32 %s155, 1
      %p159 = scmp.eq.s32.totalorder %s16, 1
      %p160 = scmp.ne.s32.totalorder %s155, %s157
      %p161 = scmp.eq.s32.totalorder %s16, 0
      %p162 = por %p160, %p161
      %p163 = scmp.ne.s32.totalorder %s155, %s157
      %p164 = scmp.eq.s32.totalorder %s21, 1
      %p165 = por %p163, %p164
      %p166 = scmp.ne.s32.totalorder %s157, %s158
      %p167 = scmp.eq.s32.totalorder %s21, 0
      %p168 = por %p166, %p167
      %p169 = scmp.ne.s32.totalorder %s157, %s158
      %p170 = scmp.eq.s32.totalorder %s22, 1
      %p171 = por %p169, %p170
      %p173 = scmp.ne.s32.totalorder %s158, %s172
      %p174 = scmp.eq.s32.totalorder %s22, 0
      %p175 = por %p173, %p174
      %s176 = ssub.s32 %s16, %s23
      %p177 = scmp.eq.s32.totalorder %s176, 0
      %s179 = sadd.s32 %s178, 1
      %s180 = scalar_select %p177, %s178, %s179
      %p183 = pneg %p177
      %p184 = scmp.eq.s32.totalorder %s16, 1
      %p185 = por %p183, %p184
      %p186 = scmp.ne.s32.totalorder %s178, %s181
      %p187 = scmp.eq.s32.totalorder %s16, 0
      %p188 = por %p186, %p187
      %p189 = scmp.ne.s32.totalorder %s178, %s181
      %p190 = scmp.eq.s32.totalorder %s21, 1
      %p191 = por %p189, %p190
      %p192 = scmp.ne.s32.totalorder %s181, %s182
      %p193 = scmp.eq.s32.totalorder %s21, 0
      %p194 = por %p192, %p193
      %p195 = scmp.ne.s32.totalorder %s181, %s182
      %p196 = scmp.eq.s32.totalorder %s22, 1
      %p197 = por %p195, %p196
      %p199 = scmp.ne.s32.totalorder %s182, %s198
      %p200 = scmp.eq.s32.totalorder %s22, 0
      %p201 = por %p199, %p200
      %p202 = scmp.le.s32.totalorder 1, %s16
      %p203 = scmp.lt.s32.totalorder %s16, 3
      %p204 = pnand %p202, %p203
      %p205 = pneg %p204
      // Predicated region
      $region9: #{tpu_custom_call.1} parent=5 // pred_check
        _
      $region10: #{tpu_custom_call.1} parent=5 // pred_check_branch
        %207 = sbr.rel (%p204) target = $region12
      $region11: #{tpu_custom_call.1} parent=5 // pred_region
        %s208 = ssub.s32 %s16, 1
        // Predicated region
        $region13: #{tpu_custom_call.1} parent=11 // pred_check
          %p209 = pneg %p63
        $region14: #{tpu_custom_call.1} parent=11 // pred_check_branch
          %211 = sbr.rel (%p209) target = $region16
        $region15: #{tpu_custom_call.1} parent=11 // pred_region
          _
        $region16: #{tpu_custom_call.1} parent=11 // pred_fallthru
          _
        // Predicated region
        $region17: #{tpu_custom_call.1} parent=11 // pred_check
          %p212 = pneg %p84
        $region18: #{tpu_custom_call.1} parent=11 // pred_check_branch
          %214 = sbr.rel (%p212) target = $region20
        $region19: #{tpu_custom_call.1} parent=11 // pred_region
          _
        $region20: #{tpu_custom_call.1} parent=11 // pred_fallthru
          _
        // Predicated region
        $region21: #{tpu_custom_call.1} parent=11 // pred_check
          %p215 = pneg %p105
        $region22: #{tpu_custom_call.1} parent=11 // pred_check_branch
          %217 = sbr.rel (%p215) target = $region24
        $region23: #{tpu_custom_call.1} parent=11 // pred_region
          _
        $region24: #{tpu_custom_call.1} parent=11 // pred_fallthru
          _
        // Predicated region
        $region25: #{tpu_custom_call.1} parent=11 // pred_check
          %p218 = pneg %p126
        $region26: #{tpu_custom_call.1} parent=11 // pred_check_branch
          %220 = sbr.rel (%p218) target = $region28
        $region27: #{tpu_custom_call.1} parent=11 // pred_region
          _
        $region28: #{tpu_custom_call.1} parent=11 // pred_fallthru
          _
        // Predicated region
        $region29: #{tpu_custom_call.1} parent=11 // pred_check
          %p221 = pneg %p147
        $region30: #{tpu_custom_call.1} parent=11 // pred_check_branch
          %223 = sbr.rel (%p221) target = $region32
        $region31: #{tpu_custom_call.1} parent=11 // pred_region
          _
        $region32: #{tpu_custom_call.1} parent=11 // pred_fallthru
          _
        // Predicated region
        $region33: #{tpu_custom_call.1} parent=11 // pred_check
          %p224 = pneg %p168
        $region34: #{tpu_custom_call.1} parent=11 // pred_check_branch
          %226 = sbr.rel (%p224) target = $region36
        $region35: #{tpu_custom_call.1} parent=11 // pred_region
          _
        $region36: #{tpu_custom_call.1} parent=11 // pred_fallthru
          _
      $region12: #{tpu_custom_call.1} parent=5 // pred_fallthru
        _
      %p227 = scmp.lt.s32.totalorder %s16, 2
      // Predicated region
      $region37: #{tpu_custom_call.1} parent=5 // pred_check
        %p228 = pneg %p227
      $region38: #{tpu_custom_call.1} parent=5 // pred_check_branch
        %230 = sbr.rel (%p228) target = $region40
      $region39: #{tpu_custom_call.1} parent=5 // pred_region
        // Predicated region
        $region41: #{tpu_custom_call.1} parent=39 // pred_check
          %p231 = pneg %p36
        $region42: #{tpu_custom_call.1} parent=39 // pred_check_branch
          %233 = sbr.rel (%p231) target = $region44
        $region43: #{tpu_custom_call.1} parent=39 // pred_region
          %s234 = sand.u32 %s26, 1
          %s235 = sand.u32 %s26, 1
          %s236 = smul.addr %s235, 24
          %s237 = scalar_lea.vmem [#allocation2], %s236
          %s238 = smul.addr %s16, 8
          %s239 = scalar_lea.vmem %s0, %s238
          // Predicated region
          $region45: #{tpu_custom_call.1} parent=43 // pred_check
            _
          $region46: #{tpu_custom_call.1} parent=43 // pred_check_branch
            %241 = sbr.rel (0) target = $region48
          $region47: #{tpu_custom_call.1} parent=43 // pred_region
            // Predicated region
            $region49: #{tpu_custom_call.1} parent=47 // pred_check
              _
            $region50: #{tpu_custom_call.1} parent=47 // pred_check_branch
              %243 = sbr.rel (0) target = $region52
            $region51: #{tpu_custom_call.1} parent=47 // pred_region
              // Predicated region
              $region64: #{tpu_custom_call.1} parent=51 // pred_check
                _
              $region65: #{tpu_custom_call.1} parent=51 // pred_check_branch
                %263 = sbr.rel (0) target = $region67
              $region66: #{tpu_custom_call.1} parent=51 // pred_region
                loop: start=0, step=1, limit=1
                $region68: #{tpu_custom_call.1} parent=66 // loop_pre_header
                  _
                $region69: #{tpu_custom_call.1} parent=66 // loop_header
                  %s265 = sphi 0, %s269
                  %p266 = scmp.ge.s32.totalorder %s265, 1
                  %s270 = sphi %s239, %s239
                  %s271 = sphi %s237, %s237
                $region70: #{tpu_custom_call.1} parent=66 // loop_header_branch
                  %268 = sbr.rel (%p266) target = $region74
                $region71: #{tpu_custom_call.1} parent=66 // loop_body
                  %v272 = vld [vmem:[%s270] sm:$0xff]
                  %273 = vst [vmem:[%s271] sm:$0xff] %v272
                  %v274 = vld [vmem:[%s270 + $0x10] sm:$0xff]
                  %275 = vst [vmem:[%s271 + $0x8] sm:$0xff] %v274
                  %v276 = vld [vmem:[%s270 + $0x20] sm:$0xff]
                  %277 = vst [vmem:[%s271 + $0x10] sm:$0xff] %v276
                $region72: #{tpu_custom_call.1} parent=66 // loop_footer
                  %s269 = sadd.s32 1, %s265
                $region73: #{tpu_custom_call.1} parent=66 // loop_footer_branch
                  %264 = sbr.rel target = $region69
                $region74: #{tpu_custom_call.1} parent=66 // loop_exit
                  _
              $region67: #{tpu_custom_call.1} parent=51 // pred_fallthru
                _
              // Predicated region
              $region75: #{tpu_custom_call.1} parent=51 // pred_check
                _
              $region76: #{tpu_custom_call.1} parent=51 // pred_check_branch
                %279 = sbr.rel target = $region78
              $region77: #{tpu_custom_call.1} parent=51 // pred_region
                _
              $region78: #{tpu_custom_call.1} parent=51 // pred_fallthru
                _
            $region52: #{tpu_custom_call.1} parent=47 // pred_fallthru
              _
            // Predicated region
            $region53: #{tpu_custom_call.1} parent=47 // pred_check
              _
            $region54: #{tpu_custom_call.1} parent=47 // pred_check_branch
              %245 = sbr.rel target = $region56
            $region55: #{tpu_custom_call.1} parent=47 // pred_region
              %s247 = ssub.s32 256, 1
              loop: start=0, step=1, limit=1
              $region57: #{tpu_custom_call.1} parent=55 // loop_pre_header
                _
              $region58: #{tpu_custom_call.1} parent=55 // loop_header
                %s249 = sphi 0, %s253
                %p250 = scmp.ge.s32.totalorder %s249, 1
                %s254 = sphi %s239, %s239
                %s255 = sphi %s237, %s237
              $region59: #{tpu_custom_call.1} parent=55 // loop_header_branch
                %252 = sbr.rel (%p250) target = $region63
              $region60: #{tpu_custom_call.1} parent=55 // loop_body
                %v256 = vld [vmem:[%s254] sm:%s247]
                %257 = vst [vmem:[%s255] sm:%s247] %v256
                %v258 = vld [vmem:[%s254 + $0x10] sm:%s247]
                %259 = vst [vmem:[%s255 + $0x8] sm:%s247] %v258
                %v260 = vld [vmem:[%s254 + $0x20] sm:%s247]
                %261 = vst [vmem:[%s255 + $0x10] sm:%s247] %v260
              $region61: #{tpu_custom_call.1} parent=55 // loop_footer
                %s253 = sadd.s32 1, %s249
              $region62: #{tpu_custom_call.1} parent=55 // loop_footer_branch
                %248 = sbr.rel target = $region58
              $region63: #{tpu_custom_call.1} parent=55 // loop_exit
                _
            $region56: #{tpu_custom_call.1} parent=47 // pred_fallthru
              _
          $region48: #{tpu_custom_call.1} parent=43 // pred_fallthru
            _
          %280 = vnop
        $region44: #{tpu_custom_call.1} parent=39 // pred_fallthru
          _
      $region40: #{tpu_custom_call.1} parent=5 // pred_fallthru
        _
      %p281 = scmp.le.s32.totalorder 1, %s16
      %p282 = scmp.lt.s32.totalorder %s16, 3
      %p283 = pnand %p281, %p282
      %p284 = pneg %p283
      // Predicated region
      $region79: #{tpu_custom_call.1} parent=5 // pred_check
        _
      $region80: #{tpu_custom_call.1} parent=5 // pred_check_branch
        %286 = sbr.rel (%p283) target = $region82
      $region81: #{tpu_custom_call.1} parent=5 // pred_region
        %s287 = ssub.s32 %s16, 1
        %s288 = sand.u32 %s29, 1
        %s289 = sand.u32 %s29, 1
        %s290 = smul.addr %s289, 24
        %s291 = scalar_lea.vmem [#allocation2], %s290
        // Predicated region
        $region83: #{tpu_custom_call.1} parent=81 // pred_check
          %p292 = pneg %p42
        $region84: #{tpu_custom_call.1} parent=81 // pred_check_branch
          %294 = sbr.rel (%p292) target = $region86
        $region85: #{tpu_custom_call.1} parent=81 // pred_region
          _
        $region86: #{tpu_custom_call.1} parent=81 // pred_fallthru
          _
        %s295 = sand.u32 %s29, 1
        %s296 = sand.u32 %s29, 1
        %s297 = smul.addr %s296, 24
        %s298 = scalar_lea.vmem [#allocation2], %s297
        %p299 = pneg %p42
        %p300 = pneg %p39
        %p301 = pneg %p63
        %p302 = pneg %p60
        %p303 = pneg %p84
        %p304 = pneg %p81
        %p305 = pneg %p105
        %p306 = pneg %p102
        %p307 = pneg %p126
        %p308 = pneg %p123
        %p309 = pneg %p147
        %p310 = pneg %p144
        %p311 = pneg %p168
        %p312 = pneg %p165
        %p313 = pneg %p194
        %p314 = pneg %p191
        %s315 = sand.u32 %s181, 1
        %s316 = scalar_lea.sflag [#allocation4], %s315
        %s317 = sand.u32 %s181, 1
        %s318 = smul.addr %s317, 4
        %s319 = scalar_lea.vmem [#allocation3], %s318
        %v320 = vld [vmem:[%s291] sm:$0xff]
        %s321 = scalar_lea.vmem %s291, 8 [#allocation2]
        %v322 = vld [vmem:[%s321] sm:$0xff]
        %s323 = scalar_lea.vmem %s291, 16 [#allocation2]
        %v324 = vld [vmem:[%s323] sm:$0xff]
        %v325 = vmul.f32 %v322, %v324
        %v326 = vadd.f32 %v320, %v325
        %v327 = vld [vmem:[%s1] sm:$0xff]
        %v328 = vld [vmem:[%s1 + $0x8] sm:$0xff]
        %v329 = vld [vmem:[%s4] sm:$0xff]
        %v330 = vld [vmem:[%s4 + $0x8] sm:$0xff]
        %332 = vset.pattern.permute.xlu0 0
        %333 = vperm.xlu0 %332, %v329
        %v334 = vpop.permute.xlu0 %333
        %337 = vset.pattern.permute.xlu0 0
        %338 = vperm.xlu0 %337, %v330
        %v339 = vpop.permute.xlu0 %338
        %vm341 = vcmask 64512
        %v343 = vsel %vm341, %v327, 0
        %v346 = vsel %vm341, %v328, 0
        %348 = vmatprep.subr.mxu0 0.0
        %349 = vmatpush1.msra.mxu0 0.0
        %350 = vmatprep.subr.mxu0 0.0
        %351 = vmatpush1.msra.mxu0 0.0
        %352 = vmatprep.subr.mxu0 0.0
        %353 = vmatpush1.msra.mxu0 0.0
        %354 = vmatprep.subr.mxu0 0.0
        %355 = vmatpush1.msra.mxu0 0.0
        %356 = vmatprep.subr.mxu0 0.0
        %357 = vmatpush1.msra.mxu0 0.0
        %358 = vmatprep.subr.mxu0 0.0
        %359 = vmatpush1.msra.mxu0 0.0
        %360 = vmatprep.subr.mxu0 0.0
        %361 = vmatpush1.msra.mxu0 0.0
        %362 = vmatprep.subr.mxu0 0.0
        %363 = vmatpush1.msra.mxu0 0.0
        %364 = vmatprep.subr.mxu0 0.0
        %365 = vmatpush1.msra.mxu0 0.0
        %366 = vmatprep.subr.mxu0 0.0
        %367 = vmatpush1.msra.mxu0 0.0
        %368 = vmatprep.subr.mxu0 0.0
        %369 = vmatpush1.msra.mxu0 0.0
        %370 = vmatprep.subr.mxu0 0.0
        %371 = vmatpush1.msra.mxu0 0.0
        %372 = vmatprep.subr.mxu0 0.0
        %373 = vmatpush1.msra.mxu0 0.0
        %374 = vmatprep.subr.mxu0 0.0
        %375 = vmatpush1.msra.mxu0 0.0
        %376 = vmatprep.subr.mxu0 0.0
        %377 = vmatpush1.msra.mxu0 0.0
        %378 = vmatprep.subr.mxu0 0.0
        %379 = vmatpush1.msra.mxu0 %v326
        %380 = vmatprep.subr.mxu0 0.0
        %381 = vmatpush2.msra.mxu0 0.0
        %382 = vmatprep.subr.mxu0 0.0
        %383 = vmatpush2.msra.mxu0 0.0
        %384 = vmatprep.subr.mxu0 0.0
        %385 = vmatpush2.msra.mxu0 0.0
        %386 = vmatprep.subr.mxu0 0.0
        %387 = vmatpush2.msra.mxu0 0.0
        %388 = vmatprep.subr.mxu0 0.0
        %389 = vmatpush2.msra.mxu0 0.0
        %390 = vmatprep.subr.mxu0 0.0
        %391 = vmatpush2.msra.mxu0 0.0
        %392 = vmatprep.subr.mxu0 0.0
        %393 = vmatpush2.msra.mxu0 0.0
        %394 = vmatprep.subr.mxu0 0.0
        %395 = vmatpush2.msra.mxu0 0.0
        %396 = vmatprep.subr.mxu0 0.0
        %397 = vmatpush2.msra.mxu0 0.0
        %398 = vmatprep.subr.mxu0 0.0
        %399 = vmatpush2.msra.mxu0 0.0
        %400 = vmatprep.subr.mxu0 0.0
        %401 = vmatpush2.msra.mxu0 0.0
        %402 = vmatprep.subr.mxu0 0.0
        %403 = vmatpush2.msra.mxu0 0.0
        %404 = vmatprep.subr.mxu0 0.0
        %405 = vmatpush2.msra.mxu0 0.0
        %406 = vmatprep.subr.mxu0 0.0
        %407 = vmatpush2.msra.mxu0 0.0
        %408 = vmatprep.subr.mxu0 0.0
        %409 = vmatpush2.msra.mxu0 0.0
        %410 = vmatprep.subr.mxu0 0.0
        %411 = vmatpush2.msra.mxu0 0.0
        %412 = vmatprep.mubr.f32.mxu0 0.0
        %413 = vmatmul.mubr.f32.gmra.mxu0 %v343
        %v414 = vpop.f32.mrf.mxu0
        %v415 = vadd.f32 %v334, %v414
        %v416 = vpop.f32.mrf.mxu0
        %417 = vmatprep.mubr.f32.mxu0 0.0
        %418 = vmatmul.mubr.f32.gmra.mxu0 %v346
        %v419 = vpop.f32.mrf.mxu0
        %v420 = vadd.f32 %v339, %v419
        %v421 = vpop.f32.mrf.mxu0
        %422 = vdwg.mxu0
        %v423 = vmax.f32 %v415, 0.0
        %v424 = vmax.f32 %v420, 0.0
        %v425 = vld [vmem:[%s2] sm:$0xff]
        %v426 = vld [vmem:[%s2 + $0x8] sm:$0xff]
        %v427 = vld [vmem:[%s2 + $0x10] sm:$0xff]
        %v428 = vld [vmem:[%s2 + $0x18] sm:$0xff]
        %v429 = vld [vmem:[%s5] sm:$0xff]
        %v430 = vld [vmem:[%s5 + $0x8] sm:$0xff]
        %v431 = vld [vmem:[%s5 + $0x10] sm:$0xff]
        %v432 = vld [vmem:[%s5 + $0x18] sm:$0xff]
        %434 = vset.pattern.permute.xlu0 0
        %435 = vperm.xlu0 %434, %v429
        %v436 = vpop.permute.xlu0 %435
        %439 = vset.pattern.permute.xlu0 0
        %440 = vperm.xlu0 %439, %v430
        %v441 = vpop.permute.xlu0 %440
        %444 = vset.pattern.permute.xlu0 0
        %445 = vperm.xlu0 %444, %v431
        %v446 = vpop.permute.xlu0 %445
        %449 = vset.pattern.permute.xlu0 0
        %450 = vperm.xlu0 %449, %v432
        %v451 = vpop.permute.xlu0 %450
        %vm453 = vcmask 130048
        %v455 = vsel %vm453, %v425, 0
        %v458 = vsel %vm453, %v426, 0
        %v461 = vsel %vm453, %v427, 0
        %v464 = vsel %vm453, %v428, 0
        %466 = vmatprep.subr.mxu0 0.0
        %467 = vmatpush1.msra.mxu0 0.0
        %468 = vmatprep.subr.mxu0 0.0
        %469 = vmatpush1.msra.mxu0 0.0
        %470 = vmatprep.subr.mxu0 0.0
        %471 = vmatpush1.msra.mxu0 0.0
        %472 = vmatprep.subr.mxu0 0.0
        %473 = vmatpush1.msra.mxu0 0.0
        %474 = vmatprep.subr.mxu0 0.0
        %475 = vmatpush1.msra.mxu0 0.0
        %476 = vmatprep.subr.mxu0 0.0
        %477 = vmatpush1.msra.mxu0 0.0
        %478 = vmatprep.subr.mxu0 0.0
        %479 = vmatpush1.msra.mxu0 0.0
        %480 = vmatprep.subr.mxu0 0.0
        %481 = vmatpush1.msra.mxu0 0.0
        %482 = vmatprep.subr.mxu0 0.0
        %483 = vmatpush1.msra.mxu0 0.0
        %484 = vmatprep.subr.mxu0 0.0
        %485 = vmatpush1.msra.mxu0 0.0
        %486 = vmatprep.subr.mxu0 0.0
        %487 = vmatpush1.msra.mxu0 0.0
        %488 = vmatprep.subr.mxu0 0.0
        %489 = vmatpush1.msra.mxu0 0.0
        %490 = vmatprep.subr.mxu0 0.0
        %491 = vmatpush1.msra.mxu0 0.0
        %492 = vmatprep.subr.mxu0 0.0
        %493 = vmatpush1.msra.mxu0 0.0
        %494 = vmatprep.subr.mxu0 0.0
        %495 = vmatpush1.msra.mxu0 %v424
        %496 = vmatprep.subr.mxu0 0.0
        %497 = vmatpush1.msra.mxu0 %v423
        %498 = vmatprep.subr.mxu0 0.0
        %499 = vmatpush2.msra.mxu0 0.0
        %500 = vmatprep.subr.mxu0 0.0
        %501 = vmatpush2.msra.mxu0 0.0
        %502 = vmatprep.subr.mxu0 0.0
        %503 = vmatpush2.msra.mxu0 0.0
        %504 = vmatprep.subr.mxu0 0.0
        %505 = vmatpush2.msra.mxu0 0.0
        %506 = vmatprep.subr.mxu0 0.0
        %507 = vmatpush2.msra.mxu0 0.0
        %508 = vmatprep.subr.mxu0 0.0
        %509 = vmatpush2.msra.mxu0 0.0
        %510 = vmatprep.subr.mxu0 0.0
        %511 = vmatpush2.msra.mxu0 0.0
        %512 = vmatprep.subr.mxu0 0.0
        %513 = vmatpush2.msra.mxu0 0.0
        %514 = vmatprep.subr.mxu0 0.0
        %515 = vmatpush2.msra.mxu0 0.0
        %516 = vmatprep.subr.mxu0 0.0
        %517 = vmatpush2.msra.mxu0 0.0
        %518 = vmatprep.subr.mxu0 0.0
        %519 = vmatpush2.msra.mxu0 0.0
        %520 = vmatprep.subr.mxu0 0.0
        %521 = vmatpush2.msra.mxu0 0.0
        %522 = vmatprep.subr.mxu0 0.0
        %523 = vmatpush2.msra.mxu0 0.0
        %524 = vmatprep.subr.mxu0 0.0
        %525 = vmatpush2.msra.mxu0 0.0
        %526 = vmatprep.subr.mxu0 0.0
        %527 = vmatpush2.msra.mxu0 0.0
        %528 = vmatprep.subr.mxu0 0.0
        %529 = vmatpush2.msra.mxu0 0.0
        %530 = vmatprep.mubr.f32.mxu0 0.0
        %531 = vmatmul.mubr.f32.gmra.mxu0 %v455
        %v532 = vpop.f32.mrf.mxu0
        %v533 = vadd.f32 %v436, %v532
        %v534 = vpop.f32.mrf.mxu0
        %535 = vmatprep.mubr.f32.mxu0 0.0
        %536 = vmatmul.mubr.f32.gmra.mxu0 %v458
        %v537 = vpop.f32.mrf.mxu0
        %v538 = vadd.f32 %v441, %v537
        %v539 = vpop.f32.mrf.mxu0
        %540 = vmatprep.mubr.f32.mxu0 0.0
        %541 = vmatmul.mubr.f32.gmra.mxu0 %v461
        %v542 = vpop.f32.mrf.mxu0
        %v543 = vadd.f32 %v446, %v542
        %v544 = vpop.f32.mrf.mxu0
        %545 = vmatprep.mubr.f32.mxu0 0.0
        %546 = vmatmul.mubr.f32.gmra.mxu0 %v464
        %v547 = vpop.f32.mrf.mxu0
        %v548 = vadd.f32 %v451, %v547
        %v549 = vpop.f32.mrf.mxu0
        %550 = vdwg.mxu0
        %v551 = vmax.f32 %v533, 0.0
        %v552 = vmax.f32 %v538, 0.0
        %v553 = vmax.f32 %v543, 0.0
        %v554 = vmax.f32 %v548, 0.0
        %v555 = vld [vmem:[%s3] sm:$0xf]
        %v556 = vld [vmem:[%s6] sm:$0xf]
        %558 = vset.pattern.permute.xlu0 0
        %559 = vperm.xlu0 %558, %v556
        %v560 = vpop.permute.xlu0 %559
        %vm562 = vcmask 261120
        %v564 = vsel %vm562, %v555, 0
        %566 = vmatprep.subr.mxu0 0.0
        %567 = vmatpush1.msra.mxu0 0.0
        %568 = vmatprep.subr.mxu0 0.0
        %569 = vmatpush1.msra.mxu0 0.0
        %570 = vmatprep.subr.mxu0 0.0
        %571 = vmatpush1.msra.mxu0 0.0
        %572 = vmatprep.subr.mxu0 0.0
        %573 = vmatpush1.msra.mxu0 0.0
        %574 = vmatprep.subr.mxu0 0.0
        %575 = vmatpush1.msra.mxu0 0.0
        %576 = vmatprep.subr.mxu0 0.0
        %577 = vmatpush1.msra.mxu0 0.0
        %578 = vmatprep.subr.mxu0 0.0
        %579 = vmatpush1.msra.mxu0 0.0
        %580 = vmatprep.subr.mxu0 0.0
        %581 = vmatpush1.msra.mxu0 0.0
        %582 = vmatprep.subr.mxu0 0.0
        %583 = vmatpush1.msra.mxu0 0.0
        %584 = vmatprep.subr.mxu0 0.0
        %585 = vmatpush1.msra.mxu0 0.0
        %586 = vmatprep.subr.mxu0 0.0
        %587 = vmatpush1.msra.mxu0 0.0
        %588 = vmatprep.subr.mxu0 0.0
        %589 = vmatpush1.msra.mxu0 0.0
        %590 = vmatprep.subr.mxu0 0.0
        %591 = vmatpush1.msra.mxu0 %v554
        %592 = vmatprep.subr.mxu0 0.0
        %593 = vmatpush1.msra.mxu0 %v553
        %594 = vmatprep.subr.mxu0 0.0
        %595 = vmatpush1.msra.mxu0 %v552
        %596 = vmatprep.subr.mxu0 0.0
        %597 = vmatpush1.msra.mxu0 %v551
        %598 = vmatprep.subr.mxu0 0.0
        %599 = vmatpush2.msra.mxu0 0.0
        %600 = vmatprep.subr.mxu0 0.0
        %601 = vmatpush2.msra.mxu0 0.0
        %602 = vmatprep.subr.mxu0 0.0
        %603 = vmatpush2.msra.mxu0 0.0
        %604 = vmatprep.subr.mxu0 0.0
        %605 = vmatpush2.msra.mxu0 0.0
        %606 = vmatprep.subr.mxu0 0.0
        %607 = vmatpush2.msra.mxu0 0.0
        %608 = vmatprep.subr.mxu0 0.0
        %609 = vmatpush2.msra.mxu0 0.0
        %610 = vmatprep.subr.mxu0 0.0
        %611 = vmatpush2.msra.mxu0 0.0
        %612 = vmatprep.subr.mxu0 0.0
        %613 = vmatpush2.msra.mxu0 0.0
        %614 = vmatprep.subr.mxu0 0.0
        %615 = vmatpush2.msra.mxu0 0.0
        %616 = vmatprep.subr.mxu0 0.0
        %617 = vmatpush2.msra.mxu0 0.0
        %618 = vmatprep.subr.mxu0 0.0
        %619 = vmatpush2.msra.mxu0 0.0
        %620 = vmatprep.subr.mxu0 0.0
        %621 = vmatpush2.msra.mxu0 0.0
        %622 = vmatprep.subr.mxu0 0.0
        %623 = vmatpush2.msra.mxu0 0.0
        %624 = vmatprep.subr.mxu0 0.0
        %625 = vmatpush2.msra.mxu0 0.0
        %626 = vmatprep.subr.mxu0 0.0
        %627 = vmatpush2.msra.mxu0 0.0
        %628 = vmatprep.subr.mxu0 0.0
        %629 = vmatpush2.msra.mxu0 0.0
        %630 = vmatprep.mubr.f32.mxu0 0.0
        %631 = vmatmul.mubr.f32.gmra.mxu0 %v564
        %v632 = vpop.f32.mrf.mxu0
        %v633 = vadd.f32 %v560, %v632
        %v634 = vpop.f32.mrf.mxu0
        %635 = vdwg.mxu0
        %v636 = vmax.f32 %v633, 0.0
        %637 = vst [vmem:[%s319] sm:$0xf] %v636
        %s638 = sand.u32 %s181, 1
        %s639 = scalar_lea.sflag [#allocation4], %s638
        %s640 = sand.u32 %s181, 1
        %s641 = smul.addr %s640, 4
        %s642 = scalar_lea.vmem [#allocation3], %s641
        // Predicated region
        $region87: #{tpu_custom_call.1} parent=81 // pred_check
          %p643 = pneg %p191
        $region88: #{tpu_custom_call.1} parent=81 // pred_check_branch
          %645 = sbr.rel (%p643) target = $region90
        $region89: #{tpu_custom_call.1} parent=81 // pred_region
          %s647 = ssub.s32 64, 64
          %648 = vsyncadd %s639, %s647
          %s649 = smul.addr %s21, 64
          %s650 = scalar_lea.hbm %s7, %s649
          %s652 = sshll.u32 %s642, 4
          %s653 = int_to_ptr.vmem [resolvable:$true] %s652
          %655 = dma.vmem_to_hbm [thread:$0]  %s653, 64, %s650, %s639
        $region90: #{tpu_custom_call.1} parent=81 // pred_fallthru
          _
      $region82: #{tpu_custom_call.1} parent=5 // pred_fallthru
        _
      %p656 = scmp.le.s32.totalorder 2, %s16
      // Predicated region
      $region91: #{tpu_custom_call.1} parent=5 // pred_check
        %p657 = pneg %p656
      $region92: #{tpu_custom_call.1} parent=5 // pred_check_branch
        %659 = sbr.rel (%p657) target = $region94
      $region93: #{tpu_custom_call.1} parent=5 // pred_region
        %s660 = ssub.s32 %s16, 2
        // Predicated region
        $region95: #{tpu_custom_call.1} parent=93 // pred_check
          %p661 = pneg %p197
        $region96: #{tpu_custom_call.1} parent=93 // pred_check_branch
          %663 = sbr.rel (%p661) target = $region98
        $region97: #{tpu_custom_call.1} parent=93 // pred_region
          %s664 = sand.u32 %s182, 1
          %s665 = scalar_lea.sflag [#allocation4], %s664
          %s666 = sand.u32 %s182, 1
          %s667 = smul.addr %s666, 4
          %s668 = scalar_lea.vmem [#allocation3], %s667
          %669 = dma.done %s665, 64
        $region98: #{tpu_custom_call.1} parent=93 // pred_fallthru
          _
      $region94: #{tpu_custom_call.1} parent=5 // pred_fallthru
        _
    $region6: #{tpu_custom_call.1} parent=1 // loop_footer
      %s20 = sadd.s32 1, %s16
    $region7: #{tpu_custom_call.1} parent=1 // loop_footer_branch
      %15 = sbr.rel target = $region3
    $region8: #{tpu_custom_call.1} parent=1 // loop_exit
      _
    %670 = vsyncpa [#allocation4], 1
    %s671 = scalar_lea.sflag [#allocation4], 1
    %672 = vsyncpa %s671, 1

</llo_original>
